<compile_context>
chip_gen: v7x
topology: tpu7x:2x2x1
jax: 0.10.0
libtpu: 0.0.40
codegen_flags: <defaults>
</compile_context>

<pallas_src>
import functools
import math

import jax
import jax.numpy as jnp
from jax.experimental import pallas as pl
from jax.experimental.pallas import tpu as pltpu

LANES = 128


def _round_up(x, m):
    return ((x + m - 1) // m) * m


# ----------------------------------------------------------------------------
# Pallas kernel.
# Grid: (N_pad // block_k, N_pad // block_r); both axes are reduction axes of
# the resident accumulator ("arbitrary"); r (A rows / P cols) is innermost.
# Per step (k, r):
#   pa   = P[:, r-tile] @ A[r-tile, k-tile]     [G_pad, block_k]
#   acc += pa @ X[k-tile]                       [G_pad, F_pad]
# Finalize (last step): out = acc @ W^T + b     [G_pad, 128]
# ----------------------------------------------------------------------------
def gcn_kernel(p_ref, a_ref, x_ref, wt_ref, b_ref, out_ref, acc_ref):
    k = pl.program_id(0)
    r = pl.program_id(1)

    @pl.when((k == 0) & (r == 0))
    def _init():
        acc_ref[...] = jnp.zeros_like(acc_ref)

    # Pool-first (reassociated, exact): bf16 MXU operands, f32 accumulation.
    pa = jnp.dot(p_ref[...], a_ref[...], preferred_element_type=jnp.float32)
    acc_ref[...] += jnp.dot(pa.astype(jnp.bfloat16), x_ref[...],
                            preferred_element_type=jnp.float32)

    @pl.when((k == pl.num_programs(0) - 1) & (r == pl.num_programs(1) - 1))
    def _finalize():
        # Linear applied once on the tiny (G_pad, F_pad) accumulator.
        out_ref[...] = (
            jnp.dot(acc_ref[...].astype(jnp.bfloat16), wt_ref[...],
                    preferred_element_type=jnp.float32)
            + b_ref[0]
        )


# ----------------------------------------------------------------------------
# Glue: dense adjacency / pooling operators built directly at padded shape
# and target dtype (avoids an extra full-size pad+cast pass over HBM).
# ----------------------------------------------------------------------------
def build_adjacency_padded(edge_index, edge_weight, n_pad, dtype=jnp.bfloat16):
    """Dense A[dst, src] (PyG SimpleConv sum-aggregation) at padded shape."""
    # TODO(synk): replace with a CSR / scalar-prefetch gather kernel for sparse
    # graphs (O(E) instead of O(N^2) HBM traffic on the dominant operand).
    src, dst = edge_index[0], edge_index[1]
    A = jnp.zeros((n_pad, n_pad), dtype=dtype)
    return A.at[dst, src].add(edge_weight.astype(dtype))


def build_pooling_padded(batch, num_nodes, num_graphs, n_pad, g_pad,
                         dtype=jnp.bfloat16):
    """Mean-pool operator P [g_pad, n_pad]; padded nodes / graphs contribute 0."""
    batch_pad = jnp.pad(batch, (0, n_pad - num_nodes), constant_values=-1)
    one_hot = (batch_pad[None, :]
               == jnp.arange(g_pad, dtype=batch.dtype)[:, None]).astype(jnp.float32)
    counts = jnp.maximum(one_hot.sum(axis=1, keepdims=True), 1.0)
    return (one_hot / counts).astype(dtype)


def gcn_forward(x, edge_index, edge_attr, batch, lin_w, lin_b, *,
                num_graphs, block_k=512, block_r=512):
    """out[g, 0] = mean_pool(SimpleConv(x, edge_index, edge_attr), batch) @ W^T + b."""
    N, F = x.shape
    G = num_graphs

    # Clamp tile sizes for small graphs; keep them multiples of 128.
    n_min = _round_up(max(N, 1), LANES)
    block_k = max(min(block_k, n_min), LANES)
    block_r = max(min(block_r, n_min), LANES)
    assert block_k % LANES == 0 and block_r % LANES == 0

    N_pad = _round_up(max(N, 1), math.lcm(block_k, block_r))
    F_pad = _round_up(F, LANES)
    G_pad = _round_up(G, 8)

    # Operands built directly at padded, lane-aligned shapes in bf16.
    # TODO(synk): on v7x stream A as fp8 / on v6e as int8 (exact for unweighted
    # graphs) to halve the dominant HBM stream.
    A_p = build_adjacency_padded(edge_index, edge_attr, N_pad)
    P_p = build_pooling_padded(batch, N, G, N_pad, G_pad)
    X_p = jnp.pad(x.astype(jnp.bfloat16), ((0, N_pad - N), (0, F_pad - F)))
    # Linear weight as a lane-dense (F_pad, 128) slab; only column 0 is real.
    Wt_p = jnp.pad(lin_w.astype(jnp.bfloat16).reshape(1, F).T,
                   ((0, F_pad - F), (0, LANES - 1)))
    b_smem = jnp.asarray(lin_b, jnp.float32).reshape(1)

    grid = (N_pad // block_k, N_pad // block_r)

    # VMEM budget: double-buffered streamed tiles + resident bits, 2x slack,
    # floored at the 16 MiB v5e default and capped below v7x's 64 MiB physical.
    vmem_bytes = (
        2 * (G_pad * block_r * 2)        # P column tile (bf16, double-buffered)
        + 2 * (block_r * block_k * 2)    # A tile
        + 2 * (block_k * F_pad * 2)      # X row tile
        + 2 * (F_pad * LANES * 2)        # W^T (resident)
        + 2 * (G_pad * LANES * 4)        # out slab
        + (G_pad * F_pad * 4)            # f32 accumulator scratch
    )
    vmem_limit = int(min(max(2 * vmem_bytes, 16 << 20), 60 << 20))

    out = pl.pallas_call(
        gcn_kernel,
        out_shape=jax.ShapeDtypeStruct((G_pad, LANES), jnp.float32),
        grid_spec=pltpu.PrefetchScalarGridSpec(
            num_scalar_prefetch=0,
            grid=grid,
            in_specs=[
                pl.BlockSpec((G_pad, block_r), lambda k, r: (0, r)),    # P col tile
                pl.BlockSpec((block_r, block_k), lambda k, r: (r, k)),  # A tile
                pl.BlockSpec((block_k, F_pad), lambda k, r: (k, 0)),    # X row tile
                pl.BlockSpec((F_pad, LANES), lambda k, r: (0, 0)),      # W^T (resident)
                pl.BlockSpec(memory_space=pltpu.SMEM),                  # bias scalar
            ],
            out_specs=pl.BlockSpec((G_pad, LANES), lambda k, r: (0, 0)),
            scratch_shapes=[pltpu.VMEM((G_pad, F_pad), jnp.float32)],
        ),
        compiler_params=pltpu.CompilerParams(
            # Both grid axes reduce into the resident accumulator.
            # TODO(synk): add a leading "parallel" per-graph axis (scalar-
            # prefetched node offsets) so v7x's two TensorCores split graphs and
            # cross-graph zero blocks of the block-diagonal A are never streamed.
            dimension_semantics=("arbitrary", "arbitrary"),
            vmem_limit_bytes=vmem_limit,
        ),
    )(P_p, A_p, X_p, Wt_p, b_smem)

    return out[:G, :1]


if __name__ == "__main__":
    key = jax.random.PRNGKey(0)
    k_x, k_e, k_w, k_lin_w, k_lin_b = jax.random.split(key, 5)

    # Small synthetic graph batch (2 graphs, 16 nodes total, 32 features).
    N = 16        # total nodes across the batch
    HIDDEN = 32   # hidden_channels == node_features_size
    E = 24        # number of edges
    G = 2         # number of graphs in the batch

    x = jax.random.normal(k_x, (N, HIDDEN), dtype=jnp.float32)
    edge_index = jax.random.randint(k_e, (2, E), 0, N, dtype=jnp.int32)
    edge_attr = jax.random.uniform(k_w, (E,), dtype=jnp.float32)
    batch = jnp.concatenate(
        [jnp.zeros((N // 2,), jnp.int32), jnp.ones((N - N // 2,), jnp.int32)]
    )

    # nn.Linear(hidden_channels, 1) parameters, deterministic init.
    lin_w = jax.random.normal(k_lin_w, (1, HIDDEN), dtype=jnp.float32) * 0.1
    lin_b = jax.random.normal(k_lin_b, (1,), dtype=jnp.float32) * 0.1

    # Jit the full pipeline (padded A/P build + Pallas kernel).
    forward = jax.jit(functools.partial(gcn_forward, num_graphs=G))
    out = jax.block_until_ready(
        forward(x, edge_index, edge_attr, batch, lin_w, lin_b)
    )

    # f32 reference with the original associativity: SimpleConv -> mean pool -> Linear.
    A_ref = (jnp.zeros((N, N), jnp.float32)
             .at[edge_index[1], edge_index[0]].add(edge_attr))
    one_hot = (batch[None, :] == jnp.arange(G)[:, None]).astype(jnp.float32)
    P_ref = one_hot / jnp.maximum(one_hot.sum(axis=1, keepdims=True), 1.0)
    ref = (P_ref @ (A_ref @ x)) @ lin_w.T + lin_b

    assert out.shape == (G, 1)
    # bf16 MXU operands (two chained bf16 casts) -> loose tolerance vs f32 ref.
    assert jnp.allclose(out, ref, atol=3e-2, rtol=3e-2), (out, ref)

    print("KERNEL_OK")
</pallas_src>

<mosaic_0001>
module attributes {stable_mosaic.version = 11 : i64} {
  func.func @gcn_kernel(%arg0: i32, %arg1: i32, %arg2: memref<8x128xbf16, #tpu.memory_space<vmem>>, %arg3: memref<128x128xbf16, #tpu.memory_space<vmem>>, %arg4: memref<128x128xbf16, #tpu.memory_space<vmem>>, %arg5: memref<128x128xbf16, #tpu.memory_space<vmem>>, %arg6: memref<1xf32, #tpu.memory_space<smem>>, %arg7: memref<8x128xf32, #tpu.memory_space<vmem>>, %arg8: memref<8x128xf32, #tpu.memory_space<vmem>>) attributes {dimension_semantics = [#tpu.dimension_semantics<arbitrary>, #tpu.dimension_semantics<arbitrary>], iteration_bounds = array<i64: 1, 1>, scalar_prefetch = 0 : i64, scratch_operands = 1 : i64, tpu.core_type = #tpu.core_type<tc>, window_params = [{transform_indices = @transform_0, window_bounds = array<i64: 8, 128>}, {transform_indices = @transform_1, window_bounds = array<i64: 128, 128>}, {transform_indices = @transform_2, window_bounds = array<i64: 128, 128>}, {pipeline_mode = #tpu.pipeline_mode<synchronous>, transform_indices = @transform_3, window_bounds = array<i64: 128, 128>}, {transform_indices = @transform_4, window_bounds = array<i64: 1>}, {pipeline_mode = #tpu.pipeline_mode<synchronous>, transform_indices = @transform_5, window_bounds = array<i64: 8, 128>}]} {
    %c0_i32 = arith.constant 0 : i32
    %0 = arith.cmpi eq, %arg0, %c0_i32 : i32
    %c0_i32_0 = arith.constant 0 : i32
    %1 = arith.cmpi eq, %arg1, %c0_i32_0 : i32
    %2 = arith.andi %0, %1 : i1
    %3 = arith.extui %2 : i1 to i32
    %c0_i32_1 = arith.constant 0 : i32
    %4 = arith.cmpi ne, %3, %c0_i32_1 : i32
    scf.if %4 {
      %cst_15 = arith.constant 0.000000e+00 : f32
      %19 = vector.broadcast %cst_15 : f32 to vector<8x128xf32>
      %c0_16 = arith.constant 0 : index
      %c0_17 = arith.constant 0 : index
      %20 = vector.load %arg8[%c0_16, %c0_17] : memref<8x128xf32, #tpu.memory_space<vmem>>, vector<8x128xf32>
      tpu.vector_store %arg8[%c0_16, %c0_17], %19 {strides = array<i32>} : memref<8x128xf32, #tpu.memory_space<vmem>>, vector<8x128xf32>,
    } else {
    }
    %c0 = arith.constant 0 : index
    %c0_2 = arith.constant 0 : index
    %5 = vector.load %arg2[%c0, %c0_2] : memref<8x128xbf16, #tpu.memory_space<vmem>>, vector<8x128xbf16>
    %c0_3 = arith.constant 0 : index
    %c0_4 = arith.constant 0 : index
    %6 = vector.load %arg3[%c0_3, %c0_4] : memref<128x128xbf16, #tpu.memory_space<vmem>>, vector<128x128xbf16>
    %cst = arith.constant dense<0.000000e+00> : vector<8x128xf32>
    %7 = tpu.matmul %5, %6, %cst {dimension_numbers = #tpu.dot_dimension_numbers<[1], [0], [0], [1], [0, 0, 1, 1], [], []>} : vector<8x128xbf16>, vector<128x128xbf16>, vector<8x128xf32> -> vector<8x128xf32>
    %c0_5 = arith.constant 0 : index
    %c0_6 = arith.constant 0 : index
    %8 = vector.load %arg8[%c0_5, %c0_6] : memref<8x128xf32, #tpu.memory_space<vmem>>, vector<8x128xf32>
    %9 = arith.truncf %7 : vector<8x128xf32> to vector<8x128xbf16>
    %c0_7 = arith.constant 0 : index
    %c0_8 = arith.constant 0 : index
    %10 = vector.load %arg4[%c0_7, %c0_8] : memref<128x128xbf16, #tpu.memory_space<vmem>>, vector<128x128xbf16>
    %cst_9 = arith.constant dense<0.000000e+00> : vector<8x128xf32>
    %11 = tpu.matmul %9, %10, %cst_9 {dimension_numbers = #tpu.dot_dimension_numbers<[1], [0], [0], [1], [0, 0, 1, 1], [], []>} : vector<8x128xbf16>, vector<128x128xbf16>, vector<8x128xf32> -> vector<8x128xf32>
    %12 = arith.addf %8, %11 : vector<8x128xf32>
    %c0_10 = arith.constant 0 : index
    %c0_11 = arith.constant 0 : index
    %13 = vector.load %arg8[%c0_10, %c0_11] : memref<8x128xf32, #tpu.memory_space<vmem>>, vector<8x128xf32>
    tpu.vector_store %arg8[%c0_10, %c0_11], %12 {strides = array<i32>} : memref<8x128xf32, #tpu.memory_space<vmem>>, vector<8x128xf32>,
    %c0_i32_12 = arith.constant 0 : i32
    %14 = arith.cmpi eq, %arg0, %c0_i32_12 : i32
    %c0_i32_13 = arith.constant 0 : i32
    %15 = arith.cmpi eq, %arg1, %c0_i32_13 : i32
    %16 = arith.andi %14, %15 : i1
    %17 = arith.extui %16 : i1 to i32
    %c0_i32_14 = arith.constant 0 : i32
    %18 = arith.cmpi ne, %17, %c0_i32_14 : i32
    scf.if %18 {
      %c0_15 = arith.constant 0 : index
      %c0_16 = arith.constant 0 : index
      %19 = vector.load %arg8[%c0_15, %c0_16] : memref<8x128xf32, #tpu.memory_space<vmem>>, vector<8x128xf32>
      %20 = arith.truncf %19 : vector<8x128xf32> to vector<8x128xbf16>
      %c0_17 = arith.constant 0 : index
      %c0_18 = arith.constant 0 : index
      %21 = vector.load %arg5[%c0_17, %c0_18] : memref<128x128xbf16, #tpu.memory_space<vmem>>, vector<128x128xbf16>
      %cst_19 = arith.constant dense<0.000000e+00> : vector<8x128xf32>
      %22 = tpu.matmul %20, %21, %cst_19 {dimension_numbers = #tpu.dot_dimension_numbers<[1], [0], [0], [1], [0, 0, 1, 1], [], []>} : vector<8x128xbf16>, vector<128x128xbf16>, vector<8x128xf32> -> vector<8x128xf32>
      %c0_20 = arith.constant 0 : index
      %23 = memref.load %arg6[%c0_20] : memref<1xf32, #tpu.memory_space<smem>>
      %24 = vector.broadcast %23 : f32 to vector<8x128xf32>
      %25 = arith.addf %22, %24 : vector<8x128xf32>
      %c0_21 = arith.constant 0 : index
      %c0_22 = arith.constant 0 : index
      %26 = vector.load %arg7[%c0_21, %c0_22] : memref<8x128xf32, #tpu.memory_space<vmem>>, vector<8x128xf32>
      tpu.vector_store %arg7[%c0_21, %c0_22], %25 {strides = array<i32>} : memref<8x128xf32, #tpu.memory_space<vmem>>, vector<8x128xf32>,
    } else {
    }
    return
  }
  func.func @transform_0(%arg0: i32, %arg1: i32) -> (i32, i32) {
    %c0_i32 = arith.constant 0 : i32
    %c0_i32_0 = arith.constant 0 : i32
    return %c0_i32, %arg1 : i32, i32
  }
  func.func @transform_1(%arg0: i32, %arg1: i32) -> (i32, i32) {
    %c0_i32 = arith.constant 0 : i32
    return %arg1, %arg0 : i32, i32
  }
  func.func @transform_2(%arg0: i32, %arg1: i32) -> (i32, i32) {
    %c0_i32 = arith.constant 0 : i32
    %c0_i32_0 = arith.constant 0 : i32
    return %arg0, %c0_i32 : i32, i32
  }
  func.func @transform_3(%arg0: i32, %arg1: i32) -> (i32, i32) {
    %c0_i32 = arith.constant 0 : i32
    %c0_i32_0 = arith.constant 0 : i32
    %c0_i32_1 = arith.constant 0 : i32
    return %c0_i32, %c0_i32_0 : i32, i32
  }
  func.func @transform_4(%arg0: i32, %arg1: i32) -> i32 {
    %c0_i32 = arith.constant 0 : i32
    %c0_i32_0 = arith.constant 0 : i32
    return %c0_i32 : i32
  }
  func.func @transform_5(%arg0: i32, %arg1: i32) -> (i32, i32) {
    %c0_i32 = arith.constant 0 : i32
    %c0_i32_0 = arith.constant 0 : i32
    %c0_i32_1 = arith.constant 0 : i32
    return %c0_i32, %c0_i32_0 : i32, i32
  }
}

</mosaic_0001>

<llo_original>
// kernel: gcn_forward.1
$region0: #{gcn_forward.1}
  #allocation0 [shape = 'u32[]', space=smem, size = 0x4, offset = 0x4, fixed_abs, tag = 'smem constant byte address 0x4 - core index']
  #allocation1 [shape = 'u32[144,128]{1,0:T(1,128)}', space=vmem, size = 0x12000, scoped, tag = 'internal scratch']
  #allocation2 [shape = 'f32[8,128]{1,0:T(8,128)}', space=vmem, size = 0x1000, scoped, tag = 'scratch operand']
  #allocation3 [shape = 'f32[1]{0:T(128)S(6)}', space=smem, size = 0x200, scoped, tag = 'scoped memory for gcn_forward.1']
  %s0 = inlined_call_operand.vmem [shape: bf16[8,128], index: 0, kind: input, shape index: {}]
  %s1 = inlined_call_operand.vmem [shape: bf16[128,128], index: 1, kind: input, shape index: {}]
  %s2 = inlined_call_operand.vmem [shape: bf16[128,128], index: 2, kind: input, shape index: {}]
  %s3 = inlined_call_operand.vmem [shape: bf16[128,128], index: 3, kind: input, shape index: {}]
  %s4 = inlined_call_operand.<no memory space> [shape: f32[1], index: 4, kind: input, shape index: {}]
  %s5 = inlined_call_operand.vmem [shape: f32[8,128], index: 5, kind: output, shape index: {}]
  %s6 = sld [smem:[#allocation0]]
  $region38: #{gcn_forward.1} parent=0
    _
  %s8 = ssub.s32 1, %s6
  %s9 = scalar_select 0, %s8, %s6
  %10 = sst [smem:[#allocation3]] %s4
  // Predicated region
  $region2: #{gcn_forward.1} parent=0 // pred_check
    _
  $region3: #{gcn_forward.1} parent=0 // pred_check_branch
    %12 = sbr.rel (0) target = $region5
  $region4: #{gcn_forward.1} parent=0 // pred_region
    _
  $region5: #{gcn_forward.1} parent=0 // pred_fallthru
    _
  // Predicated region
  $region6: #{gcn_forward.1} parent=0 // pred_check
    _
  $region7: #{gcn_forward.1} parent=0 // pred_check_branch
    %14 = sbr.rel (0) target = $region9
  $region8: #{gcn_forward.1} parent=0 // pred_region
    _
  $region9: #{gcn_forward.1} parent=0 // pred_fallthru
    _
  // Predicated region
  $region10: #{gcn_forward.1} parent=0 // pred_check
    _
  $region11: #{gcn_forward.1} parent=0 // pred_check_branch
    %16 = sbr.rel (0) target = $region13
  $region12: #{gcn_forward.1} parent=0 // pred_region
    _
  $region13: #{gcn_forward.1} parent=0 // pred_fallthru
    _
  // Predicated region
  $region14: #{gcn_forward.1} parent=0 // pred_check
    _
  $region15: #{gcn_forward.1} parent=0 // pred_check_branch
    %18 = sbr.rel (0) target = $region17
  $region16: #{gcn_forward.1} parent=0 // pred_region
    _
  $region17: #{gcn_forward.1} parent=0 // pred_fallthru
    _
  // Predicated region
  $region18: #{gcn_forward.1} parent=0 // pred_check
    _
  $region19: #{gcn_forward.1} parent=0 // pred_check_branch
    %20 = sbr.rel (0) target = $region21
  $region20: #{gcn_forward.1} parent=0 // pred_region
    _
  $region21: #{gcn_forward.1} parent=0 // pred_fallthru
    _
  %p22 = scmp.eq.s32.totalorder 0, 0
  %p23 = scmp.eq.s32.totalorder 0, 0
  %p24 = pnand %p22, %p23
  %p25 = pneg %p24
  // Predicated region
  $region22: #{gcn_forward.1} parent=0 // pred_check
    _
  $region23: #{gcn_forward.1} parent=0 // pred_check_branch
    %27 = sbr.rel (%p24) target = $region25
  $region24: #{gcn_forward.1} parent=0 // pred_region
    %28 = vst [vmem:[#allocation2] sm:$0xff] 0.0
  $region25: #{gcn_forward.1} parent=0 // pred_fallthru
    _
  %v29 = vld [vmem:[%s0] sm:$0xf]
  %v30 = vld [vmem:[%s1] sm:$0xf]
  %v31 = vld [vmem:[%s1 + $0x4] sm:$0xf]
  %v32 = vld [vmem:[%s1 + $0x8] sm:$0xf]
  %v33 = vld [vmem:[%s1 + $0xc] sm:$0xf]
  %v34 = vld [vmem:[%s1 + $0x10] sm:$0xf]
  %v35 = vld [vmem:[%s1 + $0x14] sm:$0xf]
  %v36 = vld [vmem:[%s1 + $0x18] sm:$0xf]
  %v37 = vld [vmem:[%s1 + $0x1c] sm:$0xf]
  %v38 = vld [vmem:[%s1 + $0x20] sm:$0xf]
  %v39 = vld [vmem:[%s1 + $0x24] sm:$0xf]
  %v40 = vld [vmem:[%s1 + $0x28] sm:$0xf]
  %v41 = vld [vmem:[%s1 + $0x2c] sm:$0xf]
  %v42 = vld [vmem:[%s1 + $0x30] sm:$0xf]
  %v43 = vld [vmem:[%s1 + $0x34] sm:$0xf]
  %v44 = vld [vmem:[%s1 + $0x38] sm:$0xf]
  %v45 = vld [vmem:[%s1 + $0x3c] sm:$0xf]
  %v62 = vunpack.c.l.b16 %v30
  %v63 = vunpack.c.l.b16 %v31
  %v64 = vunpack.c.l.b16 %v32
  %v65 = vunpack.c.l.b16 %v33
  %v66 = vunpack.c.l.b16 %v34
  %v67 = vunpack.c.l.b16 %v35
  %v68 = vunpack.c.l.b16 %v36
  %v69 = vunpack.c.l.b16 %v37
  %v70 = vunpack.c.l.b16 %v38
  %v71 = vunpack.c.l.b16 %v39
  %v72 = vunpack.c.l.b16 %v40
  %v73 = vunpack.c.l.b16 %v41
  %v74 = vunpack.c.l.b16 %v42
  %v75 = vunpack.c.l.b16 %v43
  %v76 = vunpack.c.l.b16 %v44
  %v77 = vunpack.c.l.b16 %v45
  %v78 = vpack.c.b16 %v63, %v62
  %v79 = vpack.c.b16 %v65, %v64
  %v80 = vpack.c.b16 %v67, %v66
  %v81 = vpack.c.b16 %v69, %v68
  %v82 = vpack.c.b16 %v71, %v70
  %v83 = vpack.c.b16 %v73, %v72
  %v84 = vpack.c.b16 %v75, %v74
  %v85 = vpack.c.b16 %v77, %v76
  %94 = vmatprep.subr.bf16.mxu0 0
  %95 = vmatpush1.bf16.msra.mxu0 %v78
  %96 = vmatprep.subr.bf16.mxu0 0
  %97 = vmatpush1.bf16.msra.mxu0 %v79
  %98 = vmatprep.subr.bf16.mxu0 0
  %99 = vmatpush1.bf16.msra.mxu0 %v80
  %100 = vmatprep.subr.bf16.mxu0 0
  %101 = vmatpush1.bf16.msra.mxu0 %v81
  %102 = vmatprep.subr.bf16.mxu0 0
  %103 = vmatpush1.bf16.msra.mxu0 %v82
  %104 = vmatprep.subr.bf16.mxu0 0
  %105 = vmatpush1.bf16.msra.mxu0 %v83
  %106 = vmatprep.subr.bf16.mxu0 0
  %107 = vmatpush1.bf16.msra.mxu0 %v84
  %108 = vmatprep.subr.bf16.mxu0 0
  %109 = vmatpush1.bf16.msra.mxu0 %v85
  %110 = vmatprep.subr.bf16.mxu0 0
  %111 = vmatpush1.bf16.msra.mxu0 0
  %112 = vmatprep.subr.bf16.mxu0 0
  %113 = vmatpush1.bf16.msra.mxu0 0
  %114 = vmatprep.subr.bf16.mxu0 0
  %115 = vmatpush1.bf16.msra.mxu0 0
  %116 = vmatprep.subr.bf16.mxu0 0
  %117 = vmatpush1.bf16.msra.mxu0 0
  %118 = vmatprep.subr.bf16.mxu0 0
  %119 = vmatpush1.bf16.msra.mxu0 0
  %120 = vmatprep.subr.bf16.mxu0 0
  %121 = vmatpush1.bf16.msra.mxu0 0
  %122 = vmatprep.subr.bf16.mxu0 0
  %123 = vmatpush1.bf16.msra.mxu0 0
  %124 = vmatprep.subr.bf16.mxu0 0
  %125 = vmatpush1.bf16.msra.mxu0 0
  %126 = vmatprep.mubr.bf16.mxu0 0
  %127 = vmatmul.mubr.bf16.gmra.mrb[0].mxu0 %v29
  %v128 = vpop.f32.mrb[0].mxu0
  %v129 = vadd.f32 0.0, %v128
  %v130 = vpop.f32.mrb[0].mxu0
  %v131 = vpop.f32.mrb[0].mxu0
  %v132 = vpop.f32.mrb[0].mxu0
  %133 = vdwg.mxu0
  %v134 = vld [vmem:[#allocation2] sm:$0xff]
  %v135 = vpack.c.bf16 %v129, %v129
  %v136 = vld [vmem:[%s2] sm:$0xf]
  %v137 = vld [vmem:[%s2 + $0x4] sm:$0xf]
  %v138 = vld [vmem:[%s2 + $0x8] sm:$0xf]
  %v139 = vld [vmem:[%s2 + $0xc] sm:$0xf]
  %v140 = vld [vmem:[%s2 + $0x10] sm:$0xf]
  %v141 = vld [vmem:[%s2 + $0x14] sm:$0xf]
  %v142 = vld [vmem:[%s2 + $0x18] sm:$0xf]
  %v143 = vld [vmem:[%s2 + $0x1c] sm:$0xf]
  %v144 = vld [vmem:[%s2 + $0x20] sm:$0xf]
  %v145 = vld [vmem:[%s2 + $0x24] sm:$0xf]
  %v146 = vld [vmem:[%s2 + $0x28] sm:$0xf]
  %v147 = vld [vmem:[%s2 + $0x2c] sm:$0xf]
  %v148 = vld [vmem:[%s2 + $0x30] sm:$0xf]
  %v149 = vld [vmem:[%s2 + $0x34] sm:$0xf]
  %v150 = vld [vmem:[%s2 + $0x38] sm:$0xf]
  %v151 = vld [vmem:[%s2 + $0x3c] sm:$0xf]
  %v168 = vunpack.c.l.b16 %v136
  %v169 = vunpack.c.l.b16 %v137
  %v170 = vunpack.c.l.b16 %v138
  %v171 = vunpack.c.l.b16 %v139
  %v172 = vunpack.c.l.b16 %v140
  %v173 = vunpack.c.l.b16 %v141
  %v174 = vunpack.c.l.b16 %v142
  %v175 = vunpack.c.l.b16 %v143
  %v176 = vunpack.c.l.b16 %v144
  %v177 = vunpack.c.l.b16 %v145
  %v178 = vunpack.c.l.b16 %v146
  %v179 = vunpack.c.l.b16 %v147
  %v180 = vunpack.c.l.b16 %v148
  %v181 = vunpack.c.l.b16 %v149
  %v182 = vunpack.c.l.b16 %v150
  %v183 = vunpack.c.l.b16 %v151
  %v184 = vpack.c.b16 %v169, %v168
  %v185 = vpack.c.b16 %v171, %v170
  %v186 = vpack.c.b16 %v173, %v172
  %v187 = vpack.c.b16 %v175, %v174
  %v188 = vpack.c.b16 %v177, %v176
  %v189 = vpack.c.b16 %v179, %v178
  %v190 = vpack.c.b16 %v181, %v180
  %v191 = vpack.c.b16 %v183, %v182
  %200 = vmatprep.subr.bf16.mxu0 0
  %201 = vmatpush1.bf16.msra.mxu0 %v184
  %202 = vmatprep.subr.bf16.mxu0 0
  %203 = vmatpush1.bf16.msra.mxu0 %v185
  %204 = vmatprep.subr.bf16.mxu0 0
  %205 = vmatpush1.bf16.msra.mxu0 %v186
  %206 = vmatprep.subr.bf16.mxu0 0
  %207 = vmatpush1.bf16.msra.mxu0 %v187
  %208 = vmatprep.subr.bf16.mxu0 0
  %209 = vmatpush1.bf16.msra.mxu0 %v188
  %210 = vmatprep.subr.bf16.mxu0 0
  %211 = vmatpush1.bf16.msra.mxu0 %v189
  %212 = vmatprep.subr.bf16.mxu0 0
  %213 = vmatpush1.bf16.msra.mxu0 %v190
  %214 = vmatprep.subr.bf16.mxu0 0
  %215 = vmatpush1.bf16.msra.mxu0 %v191
  %216 = vmatprep.subr.bf16.mxu0 0
  %217 = vmatpush1.bf16.msra.mxu0 0
  %218 = vmatprep.subr.bf16.mxu0 0
  %219 = vmatpush1.bf16.msra.mxu0 0
  %220 = vmatprep.subr.bf16.mxu0 0
  %221 = vmatpush1.bf16.msra.mxu0 0
  %222 = vmatprep.subr.bf16.mxu0 0
  %223 = vmatpush1.bf16.msra.mxu0 0
  %224 = vmatprep.subr.bf16.mxu0 0
  %225 = vmatpush1.bf16.msra.mxu0 0
  %226 = vmatprep.subr.bf16.mxu0 0
  %227 = vmatpush1.bf16.msra.mxu0 0
  %228 = vmatprep.subr.bf16.mxu0 0
  %229 = vmatpush1.bf16.msra.mxu0 0
  %230 = vmatprep.subr.bf16.mxu0 0
  %231 = vmatpush1.bf16.msra.mxu0 0
  %232 = vmatprep.mubr.bf16.mxu0 0
  %233 = vmatmul.mubr.bf16.gmra.mrb[0].mxu0 %v135
  %v234 = vpop.f32.mrb[0].mxu0
  %v235 = vadd.f32 0.0, %v234
  %v236 = vpop.f32.mrb[0].mxu0
  %v237 = vpop.f32.mrb[0].mxu0
  %v238 = vpop.f32.mrb[0].mxu0
  %239 = vdwg.mxu0
  %v240 = vadd.f32 %v134, %v235
  %241 = vst [vmem:[#allocation2] sm:$0xff] %v240
  // Predicated region
  $region26: #{gcn_forward.1} parent=0 // pred_check
    _
  $region27: #{gcn_forward.1} parent=0 // pred_check_branch
    %243 = sbr.rel (%p24) target = $region29
  $region28: #{gcn_forward.1} parent=0 // pred_region
    %v244 = vld [vmem:[#allocation2] sm:$0xff]
    %v245 = vpack.c.bf16 %v244, %v244
    %v246 = vld [vmem:[%s3] sm:$0xf]
    %v247 = vld [vmem:[%s3 + $0x4] sm:$0xf]
    %v248 = vld [vmem:[%s3 + $0x8] sm:$0xf]
    %v249 = vld [vmem:[%s3 + $0xc] sm:$0xf]
    %v250 = vld [vmem:[%s3 + $0x10] sm:$0xf]
    %v251 = vld [vmem:[%s3 + $0x14] sm:$0xf]
    %v252 = vld [vmem:[%s3 + $0x18] sm:$0xf]
    %v253 = vld [vmem:[%s3 + $0x1c] sm:$0xf]
    %v254 = vld [vmem:[%s3 + $0x20] sm:$0xf]
    %v255 = vld [vmem:[%s3 + $0x24] sm:$0xf]
    %v256 = vld [vmem:[%s3 + $0x28] sm:$0xf]
    %v257 = vld [vmem:[%s3 + $0x2c] sm:$0xf]
    %v258 = vld [vmem:[%s3 + $0x30] sm:$0xf]
    %v259 = vld [vmem:[%s3 + $0x34] sm:$0xf]
    %v260 = vld [vmem:[%s3 + $0x38] sm:$0xf]
    %v261 = vld [vmem:[%s3 + $0x3c] sm:$0xf]
    %s262 = sld [smem:[#allocation3]]
    %v263 = vstv %s262
    %v280 = vunpack.c.l.b16 %v246
    %v281 = vunpack.c.l.b16 %v247
    %v282 = vunpack.c.l.b16 %v248
    %v283 = vunpack.c.l.b16 %v249
    %v284 = vunpack.c.l.b16 %v250
    %v285 = vunpack.c.l.b16 %v251
    %v286 = vunpack.c.l.b16 %v252
    %v287 = vunpack.c.l.b16 %v253
    %v288 = vunpack.c.l.b16 %v254
    %v289 = vunpack.c.l.b16 %v255
    %v290 = vunpack.c.l.b16 %v256
    %v291 = vunpack.c.l.b16 %v257
    %v292 = vunpack.c.l.b16 %v258
    %v293 = vunpack.c.l.b16 %v259
    %v294 = vunpack.c.l.b16 %v260
    %v295 = vunpack.c.l.b16 %v261
    %v296 = vpack.c.b16 %v281, %v280
    %v297 = vpack.c.b16 %v283, %v282
    %v298 = vpack.c.b16 %v285, %v284
    %v299 = vpack.c.b16 %v287, %v286
    %v300 = vpack.c.b16 %v289, %v288
    %v301 = vpack.c.b16 %v291, %v290
    %v302 = vpack.c.b16 %v293, %v292
    %v303 = vpack.c.b16 %v295, %v294
    %312 = vmatprep.subr.bf16.mxu0 0
    %313 = vmatpush1.bf16.msra.mxu0 %v296
    %314 = vmatprep.subr.bf16.mxu0 0
    %315 = vmatpush1.bf16.msra.mxu0 %v297
    %316 = vmatprep.subr.bf16.mxu0 0
    %317 = vmatpush1.bf16.msra.mxu0 %v298
    %318 = vmatprep.subr.bf16.mxu0 0
    %319 = vmatpush1.bf16.msra.mxu0 %v299
    %320 = vmatprep.subr.bf16.mxu0 0
    %321 = vmatpush1.bf16.msra.mxu0 %v300
    %322 = vmatprep.subr.bf16.mxu0 0
    %323 = vmatpush1.bf16.msra.mxu0 %v301
    %324 = vmatprep.subr.bf16.mxu0 0
    %325 = vmatpush1.bf16.msra.mxu0 %v302
    %326 = vmatprep.subr.bf16.mxu0 0
    %327 = vmatpush1.bf16.msra.mxu0 %v303
    %328 = vmatprep.subr.bf16.mxu0 0
    %329 = vmatpush1.bf16.msra.mxu0 0
    %330 = vmatprep.subr.bf16.mxu0 0
    %331 = vmatpush1.bf16.msra.mxu0 0
    %332 = vmatprep.subr.bf16.mxu0 0
    %333 = vmatpush1.bf16.msra.mxu0 0
    %334 = vmatprep.subr.bf16.mxu0 0
    %335 = vmatpush1.bf16.msra.mxu0 0
    %336 = vmatprep.subr.bf16.mxu0 0
    %337 = vmatpush1.bf16.msra.mxu0 0
    %338 = vmatprep.subr.bf16.mxu0 0
    %339 = vmatpush1.bf16.msra.mxu0 0
    %340 = vmatprep.subr.bf16.mxu0 0
    %341 = vmatpush1.bf16.msra.mxu0 0
    %342 = vmatprep.subr.bf16.mxu0 0
    %343 = vmatpush1.bf16.msra.mxu0 0
    %344 = vmatprep.mubr.bf16.mxu0 0
    %345 = vmatmul.mubr.bf16.gmra.mrb[0].mxu0 %v245
    %v346 = vpop.f32.mrb[0].mxu0
    %v347 = vadd.f32 %v263, %v346
    %v348 = vpop.f32.mrb[0].mxu0
    %v349 = vpop.f32.mrb[0].mxu0
    %v350 = vpop.f32.mrb[0].mxu0
    %351 = vdwg.mxu0
    %352 = vst [vmem:[%s5] sm:$0xff] %v347
  $region29: #{gcn_forward.1} parent=0 // pred_fallthru
    _
  // Predicated region
  $region30: #{gcn_forward.1} parent=0 // pred_check
    _
  $region31: #{gcn_forward.1} parent=0 // pred_check_branch
    %354 = sbr.rel (0) target = $region33
  $region32: #{gcn_forward.1} parent=0 // pred_region
    _
  $region33: #{gcn_forward.1} parent=0 // pred_fallthru
    _
  // Predicated region
  $region34: #{gcn_forward.1} parent=0 // pred_check
    _
  $region35: #{gcn_forward.1} parent=0 // pred_check_branch
    %356 = sbr.rel (0) target = $region37
  $region36: #{gcn_forward.1} parent=0 // pred_region
    _
  $region37: #{gcn_forward.1} parent=0 // pred_fallthru
    _

</llo_original>
